<compile_context>
chip_gen: v7x
topology: tpu7x:2x2x1
jax: 0.10.0
libtpu: 0.0.40
codegen_flags: <defaults>
</compile_context>

<pallas_src>
import functools

import jax
import jax.numpy as jnp
from jax.experimental import pallas as pl
from jax.experimental.pallas import tpu as pltpu


EPS = 1e-5
MOMENTUM = 0.9


# ---------------------------------------------------------------------------
# Generation-aware budgets
# ---------------------------------------------------------------------------
def _tpu_vmem_bytes():
    try:
        info = pltpu.get_tpu_info()
        v = int(getattr(info, "vmem_capacity_bytes", 0) or 0)
        if v > 0:
            return v
    except Exception:
        pass
    return 64 * 1024 * 1024  # conservative default (v7x per-TC VMEM)


def _budgets():
    vmem = _tpu_vmem_bytes()
    # v7x (64 MiB): limit 48 MiB, 6 MiB tiles.  v5e/v6e (128 MiB): 96 / 8 MiB.
    vmem_limit = min((vmem * 3) // 4, 96 * 1024 * 1024)
    tile_budget = min(8 * 1024 * 1024, vmem_limit // 8)
    fast_path_bytes = int(0.45 * vmem)
    return vmem_limit, tile_budget, fast_path_bytes


def _pick_hw_tile(hw, c, itemsize, tile_budget):
    """Lane tile: multiple of 128 within the byte budget (or the full extent)."""
    bytes_per_lane = c * max(itemsize, 4)  # f32 working copy
    cap = max(128, tile_budget // bytes_per_lane)
    if hw <= cap:
        return hw                      # full extent -> always a legal block dim
    cap = max(128, (cap // 128) * 128)
    # Prefer a 128-multiple divisor of hw (no ragged tail), if it isn't tiny.
    t = cap
    while t >= 128:
        if hw % t == 0:
            break
        t -= 128
    if t >= max(128, cap // 4) and hw % t == 0:
        return t
    return cap                         # ragged tail handled via cdiv + masking


# ---------------------------------------------------------------------------
# Fast path: whole X resident in VMEM, single fused kernel (1R + 1W)
# ---------------------------------------------------------------------------
def _bn_fused_small_kernel(x_ref, g_ref, b_ref, mm_ref, mv_ref,
                           y_ref, new_mm_ref, new_mv_ref, *, inv_count):
    x = x_ref[...].astype(jnp.float32)                    # (N, C, HW)
    # Two-pass (centered) variance: better conditioned than E[x^2]-mean^2.
    s = jnp.sum(x, axis=2, keepdims=True)                 # (N, C, 1)
    mean = jnp.sum(s, axis=0, keepdims=True) * inv_count  # (1, C, 1)
    xc = x - mean
    ss = jnp.sum(xc * xc, axis=2, keepdims=True)          # (N, C, 1)
    var = jnp.sum(ss, axis=0, keepdims=True) * inv_count  # (1, C, 1)
    inv_std = jax.lax.rsqrt(var + EPS)

    gamma = g_ref[...].astype(jnp.float32)                # (1, C, 1)
    beta = b_ref[...].astype(jnp.float32)
    y_ref[...] = (xc * (gamma * inv_std) + beta).astype(y_ref.dtype)

    new_mm_ref[...] = (MOMENTUM * mm_ref[...].astype(jnp.float32)
                       + (1.0 - MOMENTUM) * mean).astype(new_mm_ref.dtype)
    new_mv_ref[...] = (MOMENTUM * mv_ref[...].astype(jnp.float32)
                       + (1.0 - MOMENTUM) * var).astype(new_mv_ref.dtype)


# ---------------------------------------------------------------------------
# Streaming path: pass 1 (partial stats) + jnp combine + pass 2 (apply)
# ---------------------------------------------------------------------------
def _bn_partial_stats_kernel(x_ref, psum_ref, psumsq_ref, *, hw, hw_tile):
    # x_ref: (1, C, hw_tile); psum/psumsq: (1, C, 1) resident across the HW axis.
    h = pl.program_id(1)

    @pl.when(h == 0)
    def _():
        psum_ref[...] = jnp.zeros_like(psum_ref)
        psumsq_ref[...] = jnp.zeros_like(psumsq_ref)

    x = x_ref[0].astype(jnp.float32)                      # (C, hw_tile)
    if hw % hw_tile != 0:                                 # ragged tail -> mask
        lane = jax.lax.broadcasted_iota(jnp.int32, x.shape, 1)
        x = jnp.where(lane + h * hw_tile < hw, x, 0.0)

    psum_ref[0] += jnp.sum(x, axis=-1, keepdims=True)     # (C, 1)
    psumsq_ref[0] += jnp.sum(x * x, axis=-1, keepdims=True)


def _bn_apply_kernel(scale_ref, shift_ref, x_ref, y_ref):
    # scale/shift: (C, 1) broadcast over lanes; x/y: (1, C, hw_tile)
    x = x_ref[0].astype(jnp.float32)
    y_ref[0] = (x * scale_ref[...] + shift_ref[...]).astype(y_ref.dtype)


# ---------------------------------------------------------------------------
# Wrapper
# ---------------------------------------------------------------------------
def batch_norm_pallas(x_nchw, gamma, beta, moving_mean, moving_var,
                      *, _force_path=None, _hw_tile=None):
    """Training-mode BatchNorm forward for 4-D NCHW input.

    gamma/beta/moving_mean/moving_var have PyTorch shape (1, C, 1, 1).
    Returns (Y in NCHW, new_moving_mean, new_moving_var) with the same shapes.
    """
    # TODO(synk): inference (training=False) branch of `batch_norm` not implemented.
    N, C, H, W = x_nchw.shape
    HW = H * W
    elems = N * C * HW
    itemsize = x_nchw.dtype.itemsize
    x_bytes = elems * itemsize

    vmem_limit, tile_budget, fast_path_bytes = _budgets()

    x3d = x_nchw.reshape(N, C, HW)          # free reshape, no transpose
    inv_count = float(1.0 / (N * HW))

    est_fast_footprint = elems * (2 * max(itemsize, 4) + 8)
    use_fast = (_force_path == "fast") or (
        _force_path is None and est_fast_footprint <= fast_path_bytes)

    if use_fast:
        # -------- single fused kernel, X resident in VMEM (1R + 1W) --------
        g = gamma.reshape(1, C, 1)
        b = beta.reshape(1, C, 1)
        mm = moving_mean.reshape(1, C, 1)
        mv = moving_var.reshape(1, C, 1)

        ce = pl.CostEstimate(
            flops=int(8 * elems),
            transcendentals=int(C),
            bytes_accessed=int(2 * x_bytes + 6 * C * 4))

        y3d, new_mm, new_mv = pl.pallas_call(
            functools.partial(_bn_fused_small_kernel, inv_count=inv_count),
            out_shape=(
                jax.ShapeDtypeStruct((N, C, HW), x_nchw.dtype),
                jax.ShapeDtypeStruct((1, C, 1), moving_mean.dtype),
                jax.ShapeDtypeStruct((1, C, 1), moving_var.dtype),
            ),
            compiler_params=pltpu.CompilerParams(
                vmem_limit_bytes=int(vmem_limit)),
            cost_estimate=ce,
        )(x3d, g, b, mm, mv)

        return (y3d.reshape(N, C, H, W),
                new_mm.reshape(1, C, 1, 1),
                new_mv.reshape(1, C, 1, 1))

    # ------------------------- streaming path ------------------------------
    hw_tile = _hw_tile if _hw_tile is not None else _pick_hw_tile(
        HW, C, itemsize, tile_budget)
    num_hw_tiles = pl.cdiv(HW, hw_tile)
    grid = (N, num_hw_tiles)

    x_spec = pl.BlockSpec((1, C, hw_tile), lambda n, h: (n, 0, h))
    part_spec = pl.BlockSpec((1, C, 1), lambda n, h: (n, 0, 0))
    small_spec = pl.BlockSpec((C, 1), lambda n, h: (0, 0))

    # ---- pass 1: per-sample partial sums (parallel over N -> both v7x TCs)
    ce1 = pl.CostEstimate(
        flops=int(3 * elems),
        transcendentals=0,
        bytes_accessed=int(x_bytes + 2 * N * C * 4))
    psum, psumsq = pl.pallas_call(
        functools.partial(_bn_partial_stats_kernel, hw=HW, hw_tile=hw_tile),
        out_shape=(
            jax.ShapeDtypeStruct((N, C, 1), jnp.float32),
            jax.ShapeDtypeStruct((N, C, 1), jnp.float32),
        ),
        grid_spec=pltpu.PrefetchScalarGridSpec(
            num_scalar_prefetch=0,
            grid=grid,
            in_specs=[x_spec],
            out_specs=(part_spec, part_spec),
        ),
        compiler_params=pltpu.CompilerParams(
            dimension_semantics=("parallel", "arbitrary"),
            vmem_limit_bytes=int(vmem_limit),
        ),
        cost_estimate=ce1,
    )(x3d)

    # ---- tiny per-channel combine (C-sized; plain jnp epilogue)
    mean = jnp.sum(psum, axis=0) * inv_count                       # (C, 1) f32
    var = jnp.maximum(jnp.sum(psumsq, axis=0) * inv_count - mean * mean, 0.0)
    inv_std = jax.lax.rsqrt(var + EPS)
    g32 = gamma.reshape(C, 1).astype(jnp.float32)
    b32 = beta.reshape(C, 1).astype(jnp.float32)
    scale = g32 * inv_std
    shift = b32 - mean * scale
    new_mm = (MOMENTUM * moving_mean.reshape(C, 1).astype(jnp.float32)
              + (1.0 - MOMENTUM) * mean).astype(moving_mean.dtype)
    new_mv = (MOMENTUM * moving_var.reshape(C, 1).astype(jnp.float32)
              + (1.0 - MOMENTUM) * var).astype(moving_var.dtype)

    # ---- pass 2: elementwise apply, fully parallel over tiles
    ce2 = pl.CostEstimate(
        flops=int(2 * elems),
        transcendentals=0,
        bytes_accessed=int(2 * x_bytes + 2 * C * 4))
    y3d = pl.pallas_call(
        _bn_apply_kernel,
        out_shape=jax.ShapeDtypeStruct((N, C, HW), x_nchw.dtype),
        grid_spec=pltpu.PrefetchScalarGridSpec(
            num_scalar_prefetch=0,
            grid=grid,
            in_specs=[small_spec, small_spec, x_spec],
            out_specs=x_spec,
        ),
        compiler_params=pltpu.CompilerParams(
            dimension_semantics=("parallel", "parallel"),
            vmem_limit_bytes=int(vmem_limit),
        ),
        cost_estimate=ce2,
    )(scale, shift, x3d)

    return (y3d.reshape(N, C, H, W),
            new_mm.reshape(1, C, 1, 1),
            new_mv.reshape(1, C, 1, 1))


# ---------------------------------------------------------------------------
# Reference + self-test
# ---------------------------------------------------------------------------
def _reference(x, gamma, beta, mmean, mvar):
    mean = jnp.mean(x, axis=(0, 2, 3), keepdims=True)
    var = jnp.mean((x - mean) ** 2, axis=(0, 2, 3), keepdims=True)
    y = gamma * (x - mean) / jnp.sqrt(var + EPS) + beta
    new_mm = MOMENTUM * mmean + (1.0 - MOMENTUM) * mean
    new_mv = MOMENTUM * mvar + (1.0 - MOMENTUM) * var
    return y, new_mm, new_mv


def _check(got, want, atol, rtol):
    assert jnp.allclose(got, want, atol=atol, rtol=rtol), (
        float(jnp.max(jnp.abs(got - want))))


if __name__ == "__main__":
    key = jax.random.PRNGKey(0)
    N, C, H, W = 2, 4, 16, 16
    kx, km, kv, kg, kb, kx2 = jax.random.split(key, 6)

    x = jax.random.normal(kx, (N, C, H, W), dtype=jnp.float32)

    # Parameter init matching BatchNorm.__init__ (num_dims=4).
    gamma = jnp.ones((1, C, 1, 1), dtype=jnp.float32)
    beta = jnp.zeros((1, C, 1, 1), dtype=jnp.float32)
    moving_mean = jnp.zeros((1, C, 1, 1), dtype=jnp.float32)
    moving_var = jnp.zeros((1, C, 1, 1), dtype=jnp.float32)

    # 1) Fast (VMEM-resident fused) path.
    y, nmm, nmv = batch_norm_pallas(x, gamma, beta, moving_mean, moving_var)
    jax.block_until_ready((y, nmm, nmv))
    y_r, mm_r, mv_r = _reference(x, gamma, beta, moving_mean, moving_var)
    _check(y, y_r, 1e-5, 1e-5)
    _check(nmm, mm_r, 1e-6, 1e-5)
    _check(nmv, mv_r, 1e-6, 1e-5)

    # 2) Streaming (two-pass) path, nonzero running stats + nontrivial gamma/beta.
    g2 = 1.0 + 0.1 * jax.random.normal(kg, (1, C, 1, 1), dtype=jnp.float32)
    b2 = 0.1 * jax.random.normal(kb, (1, C, 1, 1), dtype=jnp.float32)
    mm2 = jax.random.normal(km, (1, C, 1, 1), dtype=jnp.float32)
    mv2 = jnp.abs(jax.random.normal(kv, (1, C, 1, 1), dtype=jnp.float32)) + 1.0
    y2, nmm2, nmv2 = batch_norm_pallas(x, g2, b2, mm2, mv2, _force_path="stream")
    jax.block_until_ready((y2, nmm2, nmv2))
    y2_r, mm2_r, mv2_r = _reference(x, g2, b2, mm2, mv2)
    _check(y2, y2_r, 1e-5, 1e-5)
    _check(nmm2, mm2_r, 1e-6, 1e-5)
    _check(nmv2, mv2_r, 1e-6, 1e-5)

    # 3) Streaming path with ragged HW (HW=144, tile=128 -> cdiv grid + masking).
    C3 = 8
    x3 = jax.random.normal(kx2, (2, C3, 12, 12), dtype=jnp.float32)
    g3 = jnp.ones((1, C3, 1, 1), dtype=jnp.float32)
    b3 = jnp.zeros((1, C3, 1, 1), dtype=jnp.float32)
    mm3 = jnp.zeros((1, C3, 1, 1), dtype=jnp.float32)
    mv3 = jnp.zeros((1, C3, 1, 1), dtype=jnp.float32)
    y3, nmm3, nmv3 = batch_norm_pallas(x3, g3, b3, mm3, mv3,
                                       _force_path="stream", _hw_tile=128)
    jax.block_until_ready((y3, nmm3, nmv3))
    y3_r, mm3_r, mv3_r = _reference(x3, g3, b3, mm3, mv3)
    _check(y3, y3_r, 1e-5, 1e-5)
    _check(nmm3, mm3_r, 1e-6, 1e-5)
    _check(nmv3, mv3_r, 1e-6, 1e-5)

    print("KERNEL_OK")
</pallas_src>

<mosaic_0001>
module attributes {stable_mosaic.version = 11 : i64} {
  func.func @_bn_fused_small_kernel(%arg0: memref<2x4x256xf32, #tpu.memory_space<vmem>>, %arg1: memref<1x4x1xf32, #tpu.memory_space<vmem>>, %arg2: memref<1x4x1xf32, #tpu.memory_space<vmem>>, %arg3: memref<1x4x1xf32, #tpu.memory_space<vmem>>, %arg4: memref<1x4x1xf32, #tpu.memory_space<vmem>>, %arg5: memref<2x4x256xf32, #tpu.memory_space<vmem>>, %arg6: memref<1x4x1xf32, #tpu.memory_space<vmem>>, %arg7: memref<1x4x1xf32, #tpu.memory_space<vmem>>) attributes {dimension_semantics = [], scalar_prefetch = 0 : i64, scratch_operands = 0 : i64, tpu.core_type = #tpu.core_type<tc>} {
    %c0 = arith.constant 0 : index
    %c0_0 = arith.constant 0 : index
    %c0_1 = arith.constant 0 : index
    %0 = vector.load %arg0[%c0, %c0_0, %c0_1] : memref<2x4x256xf32, #tpu.memory_space<vmem>>, vector<2x4x256xf32>
    %cst = arith.constant dense<0.000000e+00> : vector<2x4xf32>
    %1 = vector.multi_reduction <add>, %0, %cst [2] : vector<2x4x256xf32> to vector<2x4xf32>
    %2 = vector.shape_cast %1 : vector<2x4xf32> to vector<2x4x1xf32>
    %cst_2 = arith.constant dense<0.000000e+00> : vector<4x1xf32>
    %3 = vector.multi_reduction <add>, %2, %cst_2 [0] : vector<2x4x1xf32> to vector<4x1xf32>
    %4 = vector.shape_cast %3 : vector<4x1xf32> to vector<1x4x1xf32>
    %cst_3 = arith.constant 0.001953125 : f32
    %5 = vector.broadcast %cst_3 : f32 to vector<1x4x1xf32>
    %6 = arith.mulf %4, %5 : vector<1x4x1xf32>
    %7 = vector.broadcast %6 : vector<1x4x1xf32> to vector<2x4x256xf32>
    %8 = arith.subf %0, %7 : vector<2x4x256xf32>
    %9 = arith.mulf %8, %8 : vector<2x4x256xf32>
    %cst_4 = arith.constant dense<0.000000e+00> : vector<2x4xf32>
    %10 = vector.multi_reduction <add>, %9, %cst_4 [2] : vector<2x4x256xf32> to vector<2x4xf32>
    %11 = vector.shape_cast %10 : vector<2x4xf32> to vector<2x4x1xf32>
    %cst_5 = arith.constant dense<0.000000e+00> : vector<4x1xf32>
    %12 = vector.multi_reduction <add>, %11, %cst_5 [0] : vector<2x4x1xf32> to vector<4x1xf32>
    %13 = vector.shape_cast %12 : vector<4x1xf32> to vector<1x4x1xf32>
    %cst_6 = arith.constant 0.001953125 : f32
    %14 = vector.broadcast %cst_6 : f32 to vector<1x4x1xf32>
    %15 = arith.mulf %13, %14 : vector<1x4x1xf32>
    %cst_7 = arith.constant 9.99999974E-6 : f32
    %16 = vector.broadcast %cst_7 : f32 to vector<1x4x1xf32>
    %17 = arith.addf %15, %16 : vector<1x4x1xf32>
    %18 = math.rsqrt %17 : vector<1x4x1xf32>
    %c0_8 = arith.constant 0 : index
    %c0_9 = arith.constant 0 : index
    %c0_10 = arith.constant 0 : index
    %19 = vector.load %arg1[%c0_8, %c0_9, %c0_10] : memref<1x4x1xf32, #tpu.memory_space<vmem>>, vector<1x4x1xf32>
    %c0_11 = arith.constant 0 : index
    %c0_12 = arith.constant 0 : index
    %c0_13 = arith.constant 0 : index
    %20 = vector.load %arg2[%c0_11, %c0_12, %c0_13] : memref<1x4x1xf32, #tpu.memory_space<vmem>>, vector<1x4x1xf32>
    %21 = arith.mulf %19, %18 : vector<1x4x1xf32>
    %22 = vector.broadcast %21 : vector<1x4x1xf32> to vector<2x4x256xf32>
    %23 = arith.mulf %8, %22 : vector<2x4x256xf32>
    %24 = vector.broadcast %20 : vector<1x4x1xf32> to vector<2x4x256xf32>
    %25 = arith.addf %23, %24 : vector<2x4x256xf32>
    %c0_14 = arith.constant 0 : index
    %c0_15 = arith.constant 0 : index
    %c0_16 = arith.constant 0 : index
    %26 = vector.load %arg5[%c0_14, %c0_15, %c0_16] : memref<2x4x256xf32, #tpu.memory_space<vmem>>, vector<2x4x256xf32>
    tpu.vector_store %arg5[%c0_14, %c0_15, %c0_16], %25 {strides = array<i32>} : memref<2x4x256xf32, #tpu.memory_space<vmem>>, vector<2x4x256xf32>,
    %c0_17 = arith.constant 0 : index
    %c0_18 = arith.constant 0 : index
    %c0_19 = arith.constant 0 : index
    %27 = vector.load %arg3[%c0_17, %c0_18, %c0_19] : memref<1x4x1xf32, #tpu.memory_space<vmem>>, vector<1x4x1xf32>
    %cst_20 = arith.constant 0.899999976 : f32
    %28 = vector.broadcast %cst_20 : f32 to vector<1x4x1xf32>
    %29 = arith.mulf %28, %27 : vector<1x4x1xf32>
    %cst_21 = arith.constant 1.000000e-01 : f32
    %30 = vector.broadcast %cst_21 : f32 to vector<1x4x1xf32>
    %31 = arith.mulf %30, %6 : vector<1x4x1xf32>
    %32 = arith.addf %29, %31 : vector<1x4x1xf32>
    %c0_22 = arith.constant 0 : index
    %c0_23 = arith.constant 0 : index
    %c0_24 = arith.constant 0 : index
    %33 = vector.load %arg6[%c0_22, %c0_23, %c0_24] : memref<1x4x1xf32, #tpu.memory_space<vmem>>, vector<1x4x1xf32>
    tpu.vector_store %arg6[%c0_22, %c0_23, %c0_24], %32 {strides = array<i32>} : memref<1x4x1xf32, #tpu.memory_space<vmem>>, vector<1x4x1xf32>,
    %c0_25 = arith.constant 0 : index
    %c0_26 = arith.constant 0 : index
    %c0_27 = arith.constant 0 : index
    %34 = vector.load %arg4[%c0_25, %c0_26, %c0_27] : memref<1x4x1xf32, #tpu.memory_space<vmem>>, vector<1x4x1xf32>
    %cst_28 = arith.constant 0.899999976 : f32
    %35 = vector.broadcast %cst_28 : f32 to vector<1x4x1xf32>
    %36 = arith.mulf %35, %34 : vector<1x4x1xf32>
    %cst_29 = arith.constant 1.000000e-01 : f32
    %37 = vector.broadcast %cst_29 : f32 to vector<1x4x1xf32>
    %38 = arith.mulf %37, %15 : vector<1x4x1xf32>
    %39 = arith.addf %36, %38 : vector<1x4x1xf32>
    %c0_30 = arith.constant 0 : index
    %c0_31 = arith.constant 0 : index
    %c0_32 = arith.constant 0 : index
    %40 = vector.load %arg7[%c0_30, %c0_31, %c0_32] : memref<1x4x1xf32, #tpu.memory_space<vmem>>, vector<1x4x1xf32>
    tpu.vector_store %arg7[%c0_30, %c0_31, %c0_32], %39 {strides = array<i32>} : memref<1x4x1xf32, #tpu.memory_space<vmem>>, vector<1x4x1xf32>,
    return
  }
}

</mosaic_0001>

<llo_original>
// kernel: tpu_custom_call.1
$region0: #{tpu_custom_call.1}
  #allocation0 [shape = 'u32[]', space=smem, size = 0x4, offset = 0x4, fixed_abs, tag = 'smem constant byte address 0x4 - core index']
  #allocation1 [shape = 'u32[144,128]{1,0:T(1,128)}', space=vmem, size = 0x12000, scoped, tag = 'internal scratch']
  %s0 = inlined_call_operand.vmem [shape: f32[2,4,256], index: 0, kind: input, shape index: {}]
  %s1 = inlined_call_operand.vmem [shape: f32[1,4,1], index: 1, kind: input, shape index: {}]
  %s2 = inlined_call_operand.vmem [shape: f32[1,4,1], index: 2, kind: input, shape index: {}]
  %s3 = inlined_call_operand.vmem [shape: f32[1,4,1], index: 3, kind: input, shape index: {}]
  %s4 = inlined_call_operand.vmem [shape: f32[1,4,1], index: 4, kind: input, shape index: {}]
  %s5 = inlined_call_operand.hbm [shape: f32[2,4,256], index: 5, kind: output, shape index: {0}]
  %s6 = inlined_call_operand.vmem [shape: f32[1,4,1], index: 6, kind: output, shape index: {1}]
  %s7 = inlined_call_operand.vmem [shape: f32[1,4,1], index: 7, kind: output, shape index: {2}]
  %8 = xla_tuple %s5, %s6, %s7
  %s9 = sld [smem:[#allocation0]]
  $region46: #{tpu_custom_call.1} parent=0
    _
  %s11 = ssub.s32 1, %s9
  %s12 = scalar_select 0, %s11, %s9
  $region1: #{tpu_custom_call.1} parent=0
    #allocation2 [shape = 'u8[8192]{0}', space=vmem, size = 0x2000, scoped, tag = 'output window, operand 0, single buffered']
    #allocation3 [shape = 's32[1]{0}', space=sflag, size = 0x4, scoped, tag = 'scoped memory for tpu_custom_call.1']
    %13 = vsyncpa [#allocation3], 0
    // Predicated region
    $region2: #{tpu_custom_call.1} parent=1 // pred_check
      _
    $region3: #{tpu_custom_call.1} parent=1 // pred_check_branch
      %15 = sbr.rel (0) target = $region5
    $region4: #{tpu_custom_call.1} parent=1 // pred_region
      _
    $region5: #{tpu_custom_call.1} parent=1 // pred_fallthru
      _
    // Predicated region
    $region6: #{tpu_custom_call.1} parent=1 // pred_check
      _
    $region7: #{tpu_custom_call.1} parent=1 // pred_check_branch
      %17 = sbr.rel (0) target = $region9
    $region8: #{tpu_custom_call.1} parent=1 // pred_region
      _
    $region9: #{tpu_custom_call.1} parent=1 // pred_fallthru
      _
    // Predicated region
    $region10: #{tpu_custom_call.1} parent=1 // pred_check
      _
    $region11: #{tpu_custom_call.1} parent=1 // pred_check_branch
      %19 = sbr.rel (0) target = $region13
    $region12: #{tpu_custom_call.1} parent=1 // pred_region
      _
    $region13: #{tpu_custom_call.1} parent=1 // pred_fallthru
      _
    // Predicated region
    $region14: #{tpu_custom_call.1} parent=1 // pred_check
      _
    $region15: #{tpu_custom_call.1} parent=1 // pred_check_branch
      %21 = sbr.rel (0) target = $region17
    $region16: #{tpu_custom_call.1} parent=1 // pred_region
      _
    $region17: #{tpu_custom_call.1} parent=1 // pred_fallthru
      _
    // Predicated region
    $region18: #{tpu_custom_call.1} parent=1 // pred_check
      _
    $region19: #{tpu_custom_call.1} parent=1 // pred_check_branch
      %23 = sbr.rel (0) target = $region21
    $region20: #{tpu_custom_call.1} parent=1 // pred_region
      _
    $region21: #{tpu_custom_call.1} parent=1 // pred_fallthru
      _
    %v24 = vld [vmem:[%s0] sm:$0xff]
    %v25 = vld [vmem:[%s0 + $0x8] sm:$0xff]
    %v28 = vcombine.high %v24, %v24
    %v29 = vcombine.high %v25, %v25
    %vm32 = vcmask 1043456
    %v33 = vsel %vm32, %v24, 0.0
    %v34 = vsel %vm32, %v28, 0.0
    %v35 = vadd.f32 %v33, %v34
    %36 = vadd.xlane.f32.xlu0 %v35
    %v37 = vpop.xlane.xlu0 %36
    %v38 = vsel %vm32, %v25, 0.0
    %v39 = vsel %vm32, %v29, 0.0
    %v40 = vadd.f32 %v38, %v39
    %41 = vadd.xlane.f32.xlu0 %v40
    %v42 = vpop.xlane.xlu0 %41
    %v43 = vsel %vm32, %v37, 0.0
    %v44 = vsel %vm32, %v42, 0.0
    %v45 = vadd.f32 %v43, %v44
    %v46 = vmul.f32 %v45, 0.001953125
    %v49 = vunpack.c.l.s4 839922192
    %v50 = vunpack.c.0.s8 %v49
    %v51 = vlaneseq
    %v52 = vshrl.u32 %v51, 7
    %v53 = vsub.s32 %v50, %v52
    %v54 = vrot.slane %v46, %v53
    %v56 = vsub.f32 %v24, %v54
    %v57 = vsub.f32 %v25, %v54
    %v58 = vmul.f32 %v56, %v56
    %v59 = vmul.f32 %v57, %v57
    %v62 = vcombine.high %v58, %v58
    %v63 = vcombine.high %v59, %v59
    %v66 = vsel %vm32, %v58, 0.0
    %v67 = vsel %vm32, %v62, 0.0
    %v68 = vadd.f32 %v66, %v67
    %69 = vadd.xlane.f32.xlu0 %v68
    %v70 = vpop.xlane.xlu0 %69
    %v71 = vsel %vm32, %v59, 0.0
    %v72 = vsel %vm32, %v63, 0.0
    %v73 = vadd.f32 %v71, %v72
    %74 = vadd.xlane.f32.xlu0 %v73
    %v75 = vpop.xlane.xlu0 %74
    %v76 = vsel %vm32, %v70, 0.0
    %v77 = vsel %vm32, %v75, 0.0
    %v78 = vadd.f32 %v76, %v77
    %v79 = vmul.f32 %v78, 0.001953125
    %v80 = vadd.f32 %v79, 1e-05
    %v81 = vrsqrt.pop %v80
    %v82 = vld [vmem:[%s1] sm:$0xf]
    %v83 = vld [vmem:[%s2] sm:$0xf]
    %v84 = vmul.f32 %v82, %v81
    %86 = vset.pattern.permute.xlu0 0
    %87 = vperm.xlu0 %86, %v84
    %v88 = vpop.permute.xlu0 %87
    %v90 = vunpack.c.l.s4 839922192
    %v91 = vunpack.c.0.s8 %v90
    %v92 = vlaneseq
    %v93 = vshrl.u32 %v92, 7
    %v94 = vsub.s32 %v91, %v93
    %v95 = vrot.slane %v88, %v94
    %v97 = vmul.f32 %v56, %v95
    %v98 = vmul.f32 %v57, %v95
    %100 = vset.pattern.permute.xlu0 0
    %101 = vperm.xlu0 %100, %v83
    %v102 = vpop.permute.xlu0 %101
    %v104 = vunpack.c.l.s4 839922192
    %v105 = vunpack.c.0.s8 %v104
    %v106 = vlaneseq
    %v107 = vshrl.u32 %v106, 7
    %v108 = vsub.s32 %v105, %v107
    %v109 = vrot.slane %v102, %v108
    %v111 = vadd.f32 %v97, %v109
    %v112 = vadd.f32 %v98, %v109
    %113 = vst [vmem:[#allocation2] sm:$0xff] %v111
    %114 = vst [vmem:[#allocation2 + $0x8] sm:$0xff] %v112
    %v115 = vld [vmem:[%s3] sm:$0xf]
    %v116 = vmul.f32 %v115, 0.9
    %v117 = vmul.f32 %v46, 0.1
    %v118 = vadd.f32 %v116, %v117
    %vm119 = vcmask 3072
    %120 = vst.msk [vmem:[%s6] sm:$0xf] %vm119, %v118
    %v121 = vld [vmem:[%s4] sm:$0xf]
    %v122 = vmul.f32 %v121, 0.9
    %v123 = vmul.f32 %v79, 0.1
    %v124 = vadd.f32 %v122, %v123
    %125 = vst.msk [vmem:[%s7] sm:$0xf] %vm119, %v124
    // Predicated region
    $region22: #{tpu_custom_call.1} parent=1 // pred_check
      _
    $region23: #{tpu_custom_call.1} parent=1 // pred_check_branch
      %127 = sbr.rel (0) target = $region25
    $region24: #{tpu_custom_call.1} parent=1 // pred_region
      %s129 = ssub.s32 256, 256
      %130 = vsyncadd [#allocation3], %s129
      %s131 = sshll.u32 [#allocation2], 4
      %s132 = int_to_ptr.vmem [resolvable:$true] %s131
      %137 = dma.vmem_to_hbm [thread:$0]  %s132, 256, %s5, [#allocation3], 128, 128, 8
    $region25: #{tpu_custom_call.1} parent=1 // pred_fallthru
      _
    // Predicated region
    $region26: #{tpu_custom_call.1} parent=1 // pred_check
      _
    $region27: #{tpu_custom_call.1} parent=1 // pred_check_branch
      %139 = sbr.rel (0) target = $region29
    $region28: #{tpu_custom_call.1} parent=1 // pred_region
      _
    $region29: #{tpu_custom_call.1} parent=1 // pred_fallthru
      _
    // Predicated region
    $region30: #{tpu_custom_call.1} parent=1 // pred_check
      _
    $region31: #{tpu_custom_call.1} parent=1 // pred_check_branch
      %141 = sbr.rel (0) target = $region33
    $region32: #{tpu_custom_call.1} parent=1 // pred_region
      _
    $region33: #{tpu_custom_call.1} parent=1 // pred_fallthru
      _
    // Predicated region
    $region34: #{tpu_custom_call.1} parent=1 // pred_check
      _
    $region35: #{tpu_custom_call.1} parent=1 // pred_check_branch
      %143 = sbr.rel (0) target = $region37
    $region36: #{tpu_custom_call.1} parent=1 // pred_region
      %144 = dma.done [#allocation3], 256
    $region37: #{tpu_custom_call.1} parent=1 // pred_fallthru
      _
    // Predicated region
    $region38: #{tpu_custom_call.1} parent=1 // pred_check
      _
    $region39: #{tpu_custom_call.1} parent=1 // pred_check_branch
      %146 = sbr.rel (0) target = $region41
    $region40: #{tpu_custom_call.1} parent=1 // pred_region
      _
    $region41: #{tpu_custom_call.1} parent=1 // pred_fallthru
      _
    // Predicated region
    $region42: #{tpu_custom_call.1} parent=1 // pred_check
      _
    $region43: #{tpu_custom_call.1} parent=1 // pred_check_branch
      %148 = sbr.rel (0) target = $region45
    $region44: #{tpu_custom_call.1} parent=1 // pred_region
      _
    $region45: #{tpu_custom_call.1} parent=1 // pred_fallthru
      _
    %149 = vsyncpa [#allocation3], 1

</llo_original>
